<compile_context>
chip_gen: v5e
topology: v5e:2x2
jax: 0.10.0
libtpu: 0.0.40
codegen_flags: <defaults>
</compile_context>

<pallas_src>
import jax
import jax.numpy as jnp
from jax.experimental import pallas as pl
from jax.experimental.pallas import tpu as pltpu


def _attn1d_body(x_f32, mask, w_f32, bias, out_ref):
    # x_f32 : (B, L, D) f32, mask : (B, L) or None, w_f32 : (1, D), bias scalar
    scores = jnp.sum(x_f32 * w_f32[None, :, :], axis=-1) + bias     # (B, L)
    if mask is not None:
        scores = jnp.where(mask > 0, scores, -jnp.inf)

    # Numerically stable softmax over the sequence (lane) axis, unnormalized;
    # the 1/denom is folded in after the pooling matmul.
    m = jnp.max(scores, axis=-1, keepdims=True)                     # (B, 1)
    e = jnp.exp(scores - m)                                         # (B, L)
    denom = jnp.sum(e, axis=-1, keepdims=True)                      # (B, 1)

    # Weighted sum over the sequence on the MXU: (B,1,L) @ (B,L,D) -> (B,1,D).
    pooled = jnp.einsum('bql,bld->bqd', e[:, None, :], x_f32,
                        preferred_element_type=jnp.float32)[:, 0, :]  # (B, D)

    inv = pl.reciprocal(denom, approx=False)                        # (B, 1)
    out_ref[...] = (pooled * inv).astype(out_ref.dtype)


def _attn1d_kernel_masked(x_ref, mask_ref, w_ref, b_ref, out_ref):
    _attn1d_body(x_ref[...].astype(jnp.float32), mask_ref[...],
                 w_ref[...].astype(jnp.float32), b_ref[0, 0], out_ref)


def _attn1d_kernel_nomask(x_ref, w_ref, b_ref, out_ref):
    _attn1d_body(x_ref[...].astype(jnp.float32), None,
                 w_ref[...].astype(jnp.float32), b_ref[0, 0], out_ref)


def _round_up(v, m):
    return ((v + m - 1) // m) * m


def _pick_batch_block(n, ell, d, itemsize, with_mask):
    """Largest sublane-aligned batch block whose double-buffered streaming
    inputs fit a conservative VMEM budget (safe on v5e/v6e 128 MiB and v7x
    64 MiB physical), with the batch padding waste bounded."""
    budget = 16 * 1024 * 1024                        # double-buffered x (+ mask)
    per_row = 2 * (ell * d * itemsize + (ell * 4 if with_mask else 0))
    n8 = _round_up(n, 8)
    b = max(1, int(budget // per_row))
    b = min(b, 512, n8)
    b = max(8, (b // 8) * 8)                         # sublane-aligned, >= 8
    b = min(b, n8)
    # Don't pay more than ~12% padded batch rows just to get a bigger block.
    while b > 8 and (_round_up(n, b) - n) * 8 > n:
        b -= 8
    # Keep >= 2 grid steps when the batch allows it, so the parallel batch
    # axis can split across v7x's two TensorCores (megacore on v5e/v6e).
    if n8 >= 16 and b > n8 // 2:
        b = max(8, ((n8 // 2) // 8) * 8)
    return b


_COMPILER_PARAMS = pltpu.CompilerParams(
    dimension_semantics=("parallel",),
    # Raise the scoped-VMEM cap (16 MiB default on v5e, 32 MiB on v6e/v7x)
    # while staying under v7x's 64 MiB physical VMEM.
    vmem_limit_bytes=48 * 1024 * 1024,
)


def attention1d(x, w, b, input_mask=None):
    """Pallas implementation of Attention1d.forward.

    x          : (N, L, D) array
    w          : (D,)      conv weight (squeezed from torch's (1, D, 1))
    b          : ()        conv bias   (squeezed from torch's (1,))
    input_mask : (N, L) or None; nonzero = keep position
    returns    : (N, D)
    """
    n, ell, d = x.shape
    with_mask = input_mask is not None

    bb = _pick_batch_block(n, ell, d, x.dtype.itemsize, with_mask)
    n_pad = _round_up(n, bb)

    x_p = x
    if n_pad != n:
        x_p = jnp.pad(x, ((0, n_pad - n), (0, 0), (0, 0)))

    w2 = w.reshape(1, d).astype(jnp.float32)
    b2 = jnp.asarray(b, dtype=jnp.float32).reshape(1, 1)

    x_spec = pl.BlockSpec((bb, ell, d), lambda i: (i, 0, 0))
    w_spec = pl.BlockSpec((1, d), lambda i: (0, 0))
    b_spec = pl.BlockSpec(memory_space=pltpu.MemorySpace.SMEM)
    o_spec = pl.BlockSpec((bb, d), lambda i: (i, 0))
    out_shape = jax.ShapeDtypeStruct((n_pad, d), x.dtype)
    grid = (n_pad // bb,)

    if with_mask:
        mask = input_mask.reshape(n, ell).astype(jnp.float32)
        if n_pad != n:
            # Padded rows get an all-ones mask so they stay NaN-free
            # (they are sliced off below).
            mask = jnp.pad(mask, ((0, n_pad - n), (0, 0)), constant_values=1.0)
        out = pl.pallas_call(
            _attn1d_kernel_masked,
            out_shape=out_shape,
            grid=grid,
            in_specs=[x_spec,
                      pl.BlockSpec((bb, ell), lambda i: (i, 0)),
                      w_spec, b_spec],
            out_specs=o_spec,
            compiler_params=_COMPILER_PARAMS,
        )(x_p, mask, w2, b2)
    else:
        out = pl.pallas_call(
            _attn1d_kernel_nomask,
            out_shape=out_shape,
            grid=grid,
            in_specs=[x_spec, w_spec, b_spec],
            out_specs=o_spec,
            compiler_params=_COMPILER_PARAMS,
        )(x_p, w2, b2)

    return out[:n]


def attention1d_reference(x, w, b, input_mask=None):
    scores = jnp.einsum('nld,d->nl', x, w) + b
    if input_mask is not None:
        scores = jnp.where(input_mask > 0, scores, -jnp.inf)
    attn = jax.nn.softmax(scores, axis=-1)
    return jnp.einsum('nl,nld->nd', attn, x)


if __name__ == "__main__":
    key = jax.random.PRNGKey(0)
    kx, kw, kb, km = jax.random.split(key, 4)

    n, ell, d = 2, 16, 32            # batch, seq length, in_dim
    x = jax.random.normal(kx, (n, ell, d), dtype=jnp.float32)
    # Synthetic MaskedConv1d(in_dim=d, out=1, k=1) params:
    # torch weight (1, d, 1) -> stored here as (d,); bias (1,) -> ().
    w = jax.random.normal(kw, (d,), dtype=jnp.float32) * 0.1
    b = jax.random.normal(kb, (), dtype=jnp.float32) * 0.1
    input_mask = (jax.random.uniform(km, (n, ell)) > 0.25).astype(jnp.float32)
    input_mask = input_mask.at[:, 0].set(1.0)   # guarantee >=1 valid position/row

    out = attention1d(x, w, b, input_mask)
    jax.block_until_ready(out)

    ref = attention1d_reference(x, w, b, input_mask)
    assert out.shape == (n, d)
    assert jnp.allclose(out, ref, atol=2e-5, rtol=2e-5), (out, ref)

    # Also exercise the mask-free kernel path.
    out_nomask = attention1d(x, w, b, None)
    jax.block_until_ready(out_nomask)
    ref_nomask = attention1d_reference(x, w, b, None)
    assert jnp.allclose(out_nomask, ref_nomask, atol=2e-5, rtol=2e-5)

    print("KERNEL_OK")
</pallas_src>

<mosaic_0001>
module attributes {stable_mosaic.version = 11 : i64} {
  func.func @_attn1d_kernel_masked(%arg0: i32, %arg1: memref<8x16x32xf32, #tpu.memory_space<vmem>>, %arg2: memref<8x16xf32, #tpu.memory_space<vmem>>, %arg3: memref<1x32xf32, #tpu.memory_space<vmem>>, %arg4: memref<1x1xf32, #tpu.memory_space<smem>>, %arg5: memref<8x32xf32, #tpu.memory_space<vmem>>) attributes {dimension_semantics = [#tpu.dimension_semantics<parallel>], iteration_bounds = array<i64: 1>, scalar_prefetch = 0 : i64, scratch_operands = 0 : i64, tpu.core_type = #tpu.core_type<tc>, window_params = [{transform_indices = @transform_0, window_bounds = array<i64: 8, 16, 32>}, {transform_indices = @transform_1, window_bounds = array<i64: 8, 16>}, {pipeline_mode = #tpu.pipeline_mode<synchronous>, transform_indices = @transform_2, window_bounds = array<i64: 1, 32>}, {transform_indices = @transform_3, window_bounds = array<i64: 1, 1>}, {transform_indices = @transform_4, window_bounds = array<i64: 8, 32>}]} {
    %c0 = arith.constant 0 : index
    %c0_0 = arith.constant 0 : index
    %c0_1 = arith.constant 0 : index
    %0 = vector.load %arg1[%c0, %c0_0, %c0_1] : memref<8x16x32xf32, #tpu.memory_space<vmem>>, vector<8x16x32xf32>
    %c0_2 = arith.constant 0 : index
    %c0_3 = arith.constant 0 : index
    %1 = vector.load %arg2[%c0_2, %c0_3] : memref<8x16xf32, #tpu.memory_space<vmem>>, vector<8x16xf32>
    %c0_4 = arith.constant 0 : index
    %c0_5 = arith.constant 0 : index
    %2 = vector.load %arg3[%c0_4, %c0_5] : memref<1x32xf32, #tpu.memory_space<vmem>>, vector<1x32xf32>
    %c0_6 = arith.constant 0 : index
    %c0_7 = arith.constant 0 : index
    %3 = memref.load %arg4[%c0_6, %c0_7] : memref<1x1xf32, #tpu.memory_space<smem>>
    %4 = vector.shape_cast %2 : vector<1x32xf32> to vector<1x1x32xf32>
    %5 = vector.broadcast %4 : vector<1x1x32xf32> to vector<8x16x32xf32>
    %6 = arith.mulf %0, %5 : vector<8x16x32xf32>
    %cst = arith.constant dense<0.000000e+00> : vector<8x16xf32>
    %7 = vector.multi_reduction <add>, %6, %cst [2] : vector<8x16x32xf32> to vector<8x16xf32>
    %8 = vector.broadcast %3 : f32 to vector<8x16xf32>
    %9 = arith.addf %7, %8 : vector<8x16xf32>
    %cst_8 = arith.constant 0.000000e+00 : f32
    %10 = vector.broadcast %cst_8 : f32 to vector<8x16xf32>
    %11 = arith.cmpf ogt, %1, %10 : vector<8x16xf32>
    %cst_9 = arith.constant 0xFF800000 : f32
    %12 = vector.broadcast %cst_9 : f32 to vector<8x16xf32>
    %13 = arith.select %11, %9, %12 : vector<8x16xi1>, vector<8x16xf32>
    %cst_10 = arith.constant dense<0xFF800000> : vector<8xf32>
    %14 = vector.multi_reduction <maximumf>, %13, %cst_10 [1] : vector<8x16xf32> to vector<8xf32>
    %15 = vector.shape_cast %14 : vector<8xf32> to vector<8x1xf32>
    %16 = vector.broadcast %15 : vector<8x1xf32> to vector<8x16xf32>
    %17 = arith.subf %13, %16 : vector<8x16xf32>
    %18 = math.exp %17 : vector<8x16xf32>
    %cst_11 = arith.constant dense<0.000000e+00> : vector<8xf32>
    %19 = vector.multi_reduction <add>, %18, %cst_11 [1] : vector<8x16xf32> to vector<8xf32>
    %20 = vector.shape_cast %19 : vector<8xf32> to vector<8x1xf32>
    %21 = vector.shape_cast %18 : vector<8x16xf32> to vector<8x1x16xf32>
    "tpu.trace_start"() <{level = 10 : i32, message = "bql,bld->bqd"}> : () -> ()
    %cst_12 = arith.constant dense<0.000000e+00> : vector<8x1x32xf32>
    %22 = tpu.matmul %21, %0, %cst_12 {dimension_numbers = #tpu.dot_dimension_numbers<[2], [1], [1], [2], [0, 0, 0, 1, 1, 2], [0], [0]>} : vector<8x1x16xf32>, vector<8x16x32xf32>, vector<8x1x32xf32> -> vector<8x1x32xf32>
    "tpu.trace_stop"() : () -> ()
    %23 = vector.shape_cast %22 : vector<8x1x32xf32> to vector<8x32xf32>
    %24 = tpu.reciprocal %20 : vector<8x1xf32> -> vector<8x1xf32>
    %25 = vector.broadcast %24 : vector<8x1xf32> to vector<8x32xf32>
    %26 = arith.mulf %23, %25 : vector<8x32xf32>
    %c0_13 = arith.constant 0 : index
    %c0_14 = arith.constant 0 : index
    %27 = vector.load %arg5[%c0_13, %c0_14] : memref<8x32xf32, #tpu.memory_space<vmem>>, vector<8x32xf32>
    tpu.vector_store %arg5[%c0_13, %c0_14], %26 {strides = array<i32>} : memref<8x32xf32, #tpu.memory_space<vmem>>, vector<8x32xf32>,
    return
  }
  func.func @transform_0(%arg0: i32) -> (i32, i32, i32) {
    %c0_i32 = arith.constant 0 : i32
    %c0_i32_0 = arith.constant 0 : i32
    %c0_i32_1 = arith.constant 0 : i32
    return %arg0, %c0_i32, %c0_i32_0 : i32, i32, i32
  }
  func.func @transform_1(%arg0: i32) -> (i32, i32) {
    %c0_i32 = arith.constant 0 : i32
    %c0_i32_0 = arith.constant 0 : i32
    return %arg0, %c0_i32 : i32, i32
  }
  func.func @transform_2(%arg0: i32) -> (i32, i32) {
    %c0_i32 = arith.constant 0 : i32
    %c0_i32_0 = arith.constant 0 : i32
    %c0_i32_1 = arith.constant 0 : i32
    return %c0_i32, %c0_i32_0 : i32, i32
  }
  func.func @transform_3(%arg0: i32) -> (i32, i32) {
    %c0_i32 = arith.constant 0 : i32
    %c0_i32_0 = arith.constant 0 : i32
    %c0_i32_1 = arith.constant 0 : i32
    return %c0_i32, %c0_i32_0 : i32, i32
  }
  func.func @transform_4(%arg0: i32) -> (i32, i32) {
    %c0_i32 = arith.constant 0 : i32
    %c0_i32_0 = arith.constant 0 : i32
    return %arg0, %c0_i32 : i32, i32
  }
}

</mosaic_0001>

<llo_original>
// kernel: tpu_custom_call.1
$region0: #{tpu_custom_call.1}
  #allocation0 [shape = 'u32[]', space=smem, size = 0x4, offset = 0x4, fixed_abs, tag = 'smem constant byte address 0x4 - core index']
  #allocation1 [shape = 'u32[72,128]{1,0:T(1,128)}', space=vmem, size = 0x9000, scoped, tag = 'internal scratch']
  #allocation2 [shape = 'f32[1,1]{1,0:T(1,128)S(6)}', space=smem, size = 0x200, scoped, tag = 'scoped memory for tpu_custom_call.1']
  %s0 = inlined_call_operand.hbm [shape: f32[8,16,32], index: 0, kind: input, shape index: {}]
  %s1 = inlined_call_operand.hbm [shape: f32[8,16], index: 1, kind: input, shape index: {}]
  %s2 = inlined_call_operand.vmem [shape: f32[1,32], index: 2, kind: input, shape index: {}]
  %s3 = inlined_call_operand.<no memory space> [shape: f32[1,1], index: 3, kind: input, shape index: {}]
  %s4 = inlined_call_operand.hbm [shape: f32[8,32], index: 4, kind: output, shape index: {}]
  %s5 = sld [smem:[#allocation0]]
  $region34: #{tpu_custom_call.1} parent=0
    _
  %s7 = ssub.s32 1, %s5
  %s8 = scalar_select 0, %s7, %s5
  %9 = sst [smem:[#allocation2]] %s3
  $region1: #{tpu_custom_call.1} parent=0
    #allocation3 [shape = 'u8[65536]{0}', space=vmem, size = 0x10000, scoped, tag = 'input window, operand 0, single buffered']
    #allocation4 [shape = 's32[1]{0}', space=sflag, size = 0x4, scoped, tag = 'scoped memory for tpu_custom_call.1']
    #allocation5 [shape = 's32[1]{0}', space=sflag, size = 0x4, scoped, tag = 'scoped memory for tpu_custom_call.1']
    #allocation6 [shape = 'u8[4096]{0}', space=vmem, size = 0x1000, scoped, tag = 'input window, operand 1, single buffered']
    #allocation7 [shape = 's32[1]{0}', space=sflag, size = 0x4, scoped, tag = 'scoped memory for tpu_custom_call.1']
    #allocation8 [shape = 'u8[4096]{0}', space=vmem, size = 0x1000, scoped, tag = 'output window, operand 0, single buffered']
    %10 = vsyncpa [#allocation4], 0
    %11 = vsyncpa [#allocation7], 0
    %12 = vsyncpa [#allocation5], 0
    // Predicated region
    $region2: #{tpu_custom_call.1} parent=1 // pred_check
      _
    $region3: #{tpu_custom_call.1} parent=1 // pred_check_branch
      %14 = sbr.rel (0) target = $region5
    $region4: #{tpu_custom_call.1} parent=1 // pred_region
      %16 = vsyncadd [#allocation4], 0
      %s17 = sshll.u32 %s0, 4
      %s18 = int_to_ptr.hbm [resolvable:$true] %s17
      %s19 = sshll.u32 [#allocation3], 4
      %s20 = int_to_ptr.vmem [resolvable:$true] %s19
      %25 = dma.hbm_to_vmem [thread:$0]  %s18, 2048, %s20, [#allocation4], 128, 128, 8
    $region5: #{tpu_custom_call.1} parent=1 // pred_fallthru
      _
    // Predicated region
    $region6: #{tpu_custom_call.1} parent=1 // pred_check
      _
    $region7: #{tpu_custom_call.1} parent=1 // pred_check_branch
      %27 = sbr.rel (0) target = $region9
    $region8: #{tpu_custom_call.1} parent=1 // pred_region
      %29 = vsyncadd [#allocation7], 0
      %s31 = sshll.u32 %s1, 4
      %s32 = int_to_ptr.hbm [resolvable:$true] %s31
      %s33 = sshll.u32 [#allocation6], 4
      %s34 = int_to_ptr.vmem [resolvable:$true] %s33
      %36 = dma.hbm_to_vmem [thread:$0]  %s32, 128, %s34, [#allocation7]
    $region9: #{tpu_custom_call.1} parent=1 // pred_fallthru
      _
    // Predicated region
    $region10: #{tpu_custom_call.1} parent=1 // pred_check
      _
    $region11: #{tpu_custom_call.1} parent=1 // pred_check_branch
      %38 = sbr.rel (0) target = $region13
    $region12: #{tpu_custom_call.1} parent=1 // pred_region
      _
    $region13: #{tpu_custom_call.1} parent=1 // pred_fallthru
      _
    // Predicated region
    $region14: #{tpu_custom_call.1} parent=1 // pred_check
      _
    $region15: #{tpu_custom_call.1} parent=1 // pred_check_branch
      %40 = sbr.rel (0) target = $region17
    $region16: #{tpu_custom_call.1} parent=1 // pred_region
      _
    $region17: #{tpu_custom_call.1} parent=1 // pred_fallthru
      _
    // Predicated region
    $region18: #{tpu_custom_call.1} parent=1 // pred_check
      _
    $region19: #{tpu_custom_call.1} parent=1 // pred_check_branch
      %42 = sbr.rel (0) target = $region21
    $region20: #{tpu_custom_call.1} parent=1 // pred_region
      %44 = dma.done [#allocation4], 2048
    $region21: #{tpu_custom_call.1} parent=1 // pred_fallthru
      _
    // Predicated region
    $region22: #{tpu_custom_call.1} parent=1 // pred_check
      _
    $region23: #{tpu_custom_call.1} parent=1 // pred_check_branch
      %46 = sbr.rel (0) target = $region25
    $region24: #{tpu_custom_call.1} parent=1 // pred_region
      %48 = dma.done [#allocation7], 128
    $region25: #{tpu_custom_call.1} parent=1 // pred_fallthru
      _
    %v49 = vld [vmem:[#allocation3] sm:$0xff]
    %v50 = vld [vmem:[#allocation3 + $0x8] sm:$0xff]
    %v51 = vld [vmem:[#allocation3 + $0x10] sm:$0xff]
    %v52 = vld [vmem:[#allocation3 + $0x18] sm:$0xff]
    %v53 = vld [vmem:[#allocation3 + $0x20] sm:$0xff]
    %v54 = vld [vmem:[#allocation3 + $0x28] sm:$0xff]
    %v55 = vld [vmem:[#allocation3 + $0x30] sm:$0xff]
    %v56 = vld [vmem:[#allocation3 + $0x38] sm:$0xff]
    %v57 = vld [vmem:[#allocation3 + $0x40] sm:$0xff]
    %v58 = vld [vmem:[#allocation3 + $0x48] sm:$0xff]
    %v59 = vld [vmem:[#allocation3 + $0x50] sm:$0xff]
    %v60 = vld [vmem:[#allocation3 + $0x58] sm:$0xff]
    %v61 = vld [vmem:[#allocation3 + $0x60] sm:$0xff]
    %v62 = vld [vmem:[#allocation3 + $0x68] sm:$0xff]
    %v63 = vld [vmem:[#allocation3 + $0x70] sm:$0xff]
    %v64 = vld [vmem:[#allocation3 + $0x78] sm:$0xff]
    %v65 = vld [vmem:[#allocation6] sm:$0xff]
    %v66 = vld [vmem:[%s2] sm:$0x1]
    %s67 = sld [smem:[#allocation2]]
    %v69 = vperm.slane %v66, 0
    %v71 = vmul.f32 %v49, %v69
    %v72 = vmul.f32 %v50, %v69
    %v73 = vmul.f32 %v51, %v69
    %v74 = vmul.f32 %v52, %v69
    %v75 = vmul.f32 %v53, %v69
    %v76 = vmul.f32 %v54, %v69
    %v77 = vmul.f32 %v55, %v69
    %v78 = vmul.f32 %v56, %v69
    %v79 = vmul.f32 %v57, %v69
    %v80 = vmul.f32 %v58, %v69
    %v81 = vmul.f32 %v59, %v69
    %v82 = vmul.f32 %v60, %v69
    %v83 = vmul.f32 %v61, %v69
    %v84 = vmul.f32 %v62, %v69
    %v85 = vmul.f32 %v63, %v69
    %v86 = vmul.f32 %v64, %v69
    %vm87 = vcmask 261120
    %v88 = vsel %vm87, %v71, 0.0
    %89 = vadd.xlane.f32.xlu0 %v88
    %v90 = vpop.xlane.xlu0 %89
    %v91 = vsel %vm87, %v72, 0.0
    %92 = vadd.xlane.f32.xlu0 %v91
    %v93 = vpop.xlane.xlu0 %92
    %v94 = vsel %vm87, %v73, 0.0
    %95 = vadd.xlane.f32.xlu0 %v94
    %v96 = vpop.xlane.xlu0 %95
    %v97 = vsel %vm87, %v74, 0.0
    %98 = vadd.xlane.f32.xlu0 %v97
    %v99 = vpop.xlane.xlu0 %98
    %v100 = vsel %vm87, %v75, 0.0
    %101 = vadd.xlane.f32.xlu0 %v100
    %v102 = vpop.xlane.xlu0 %101
    %v103 = vsel %vm87, %v76, 0.0
    %104 = vadd.xlane.f32.xlu0 %v103
    %v105 = vpop.xlane.xlu0 %104
    %v106 = vsel %vm87, %v77, 0.0
    %107 = vadd.xlane.f32.xlu0 %v106
    %v108 = vpop.xlane.xlu0 %107
    %v109 = vsel %vm87, %v78, 0.0
    %110 = vadd.xlane.f32.xlu0 %v109
    %v111 = vpop.xlane.xlu0 %110
    %v112 = vsel %vm87, %v79, 0.0
    %113 = vadd.xlane.f32.xlu0 %v112
    %v114 = vpop.xlane.xlu0 %113
    %v115 = vsel %vm87, %v80, 0.0
    %116 = vadd.xlane.f32.xlu0 %v115
    %v117 = vpop.xlane.xlu0 %116
    %v118 = vsel %vm87, %v81, 0.0
    %119 = vadd.xlane.f32.xlu0 %v118
    %v120 = vpop.xlane.xlu0 %119
    %v121 = vsel %vm87, %v82, 0.0
    %122 = vadd.xlane.f32.xlu0 %v121
    %v123 = vpop.xlane.xlu0 %122
    %v124 = vsel %vm87, %v83, 0.0
    %125 = vadd.xlane.f32.xlu0 %v124
    %v126 = vpop.xlane.xlu0 %125
    %v127 = vsel %vm87, %v84, 0.0
    %128 = vadd.xlane.f32.xlu0 %v127
    %v129 = vpop.xlane.xlu0 %128
    %v130 = vsel %vm87, %v85, 0.0
    %131 = vadd.xlane.f32.xlu0 %v130
    %v132 = vpop.xlane.xlu0 %131
    %v133 = vsel %vm87, %v86, 0.0
    %134 = vadd.xlane.f32.xlu0 %v133
    %v135 = vpop.xlane.xlu0 %134
    %v136 = vstv %s67
    %v137 = vadd.f32 %v90, %v136
    %v138 = vadd.f32 %v93, %v136
    %v139 = vadd.f32 %v96, %v136
    %v140 = vadd.f32 %v99, %v136
    %v141 = vadd.f32 %v102, %v136
    %v142 = vadd.f32 %v105, %v136
    %v143 = vadd.f32 %v108, %v136
    %v144 = vadd.f32 %v111, %v136
    %v145 = vadd.f32 %v114, %v136
    %v146 = vadd.f32 %v117, %v136
    %v147 = vadd.f32 %v120, %v136
    %v148 = vadd.f32 %v123, %v136
    %v149 = vadd.f32 %v126, %v136
    %v150 = vadd.f32 %v129, %v136
    %v151 = vadd.f32 %v132, %v136
    %v152 = vadd.f32 %v135, %v136
    %vm153 = vcmp.gt.f32.partialorder %v65, 0.0
    %v170 = vlaneseq
    %v171 = vand.u32 %v170, 127
    %v172 = vperm.slane %v137, %v171
    %v173 = vadd.s32 %v171, 4294967288
    %v174 = vperm.slane %v138, %v173
    %vm175 = vcmask 130112
    %v176 = vsel %vm175, %v174, %v172
    %v177 = vperm.slane %v139, %v171
    %v178 = vperm.slane %v140, %v173
    %v179 = vsel %vm175, %v178, %v177
    %v180 = vperm.slane %v141, %v171
    %v181 = vperm.slane %v142, %v173
    %v182 = vsel %vm175, %v181, %v180
    %v183 = vperm.slane %v143, %v171
    %v184 = vperm.slane %v144, %v173
    %v185 = vsel %vm175, %v184, %v183
    %v186 = vperm.slane %v145, %v171
    %v187 = vperm.slane %v146, %v173
    %v188 = vsel %vm175, %v187, %v186
    %v189 = vperm.slane %v147, %v171
    %v190 = vperm.slane %v148, %v173
    %v191 = vsel %vm175, %v190, %v189
    %v192 = vperm.slane %v149, %v171
    %v193 = vperm.slane %v150, %v173
    %v194 = vsel %vm175, %v193, %v192
    %v195 = vperm.slane %v151, %v171
    %v196 = vperm.slane %v152, %v173
    %v197 = vsel %vm175, %v196, %v195
    %vm198 = vcmask 1041409
    %v199 = vsel %vm198, %v179, %v176
    %vm200 = vcmask 1042434
    %v201 = vsel %vm200, %v182, %v199
    %vm202 = vcmask 1043459
    %v203 = vsel %vm202, %v185, %v201
    %vm204 = vcmask 1044484
    %v205 = vsel %vm204, %v188, %v203
    %vm206 = vcmask 1045509
    %v207 = vsel %vm206, %v191, %v205
    %vm208 = vcmask 1046534
    %v209 = vsel %vm208, %v194, %v207
    %vm210 = vcmask 1047559
    %v211 = vsel %vm210, %v197, %v209
    %v213 = vsel %vm153, %v211, -inf
    %vm214 = vcmask 130048
    %v215 = vsel %vm214, %v213, -inf
    %216 = vmax.xlane.f32.xlu0 %v215
    %v217 = vpop.xlane.xlu0 %216
    %v218 = vsub.f32 %v213, %v217
    %v219 = vmul.f32 %v218, 1.442695
    %v220 = vpow.pop %v219
    %v221 = vsel %vm214, %v220, 0.0
    %222 = vadd.xlane.f32.xlu0 %v221
    %v223 = vpop.xlane.xlu0 %222
    %v225 = vrot.slane %v220, 1
    %v226 = vrot.slane %v220, 2
    %v227 = vrot.slane %v220, 3
    %v228 = vrot.slane %v220, 4
    %v229 = vrot.slane %v220, 5
    %v230 = vrot.slane %v220, 6
    %v231 = vrot.slane %v220, 7
    %v232 = vsel %vm214, %v220, 0
    %234 = vmatpush.msra.mxu0 0.0
    %235 = vmatpush.msra.mxu0 0.0
    %236 = vmatpush.msra.mxu0 0.0
    %237 = vmatpush.msra.mxu0 0.0
    %238 = vmatpush.msra.mxu0 0.0
    %239 = vmatpush.msra.mxu0 0.0
    %240 = vmatpush.msra.mxu0 0.0
    %241 = vmatpush.msra.mxu0 0.0
    %242 = vmatpush.msra.mxu0 0.0
    %243 = vmatpush.msra.mxu0 0.0
    %244 = vmatpush.msra.mxu0 0.0
    %245 = vmatpush.msra.mxu0 0.0
    %246 = vmatpush.msra.mxu0 0.0
    %247 = vmatpush.msra.mxu0 0.0
    %248 = vmatpush.msra.mxu0 %v50
    %249 = vmatpush.msra.mxu0 %v49
    %250 = vmatmul.f32.gmra.mxu0 %v232
    %v251 = vpop.f32.mrf.mxu0
    %v252 = vadd.f32 0.0, %v251
    %253 = vdwg.mxu0
    %v254 = vsel %vm214, %v225, 0
    %256 = vmatpush.msra.mxu0 0.0
    %257 = vmatpush.msra.mxu0 0.0
    %258 = vmatpush.msra.mxu0 0.0
    %259 = vmatpush.msra.mxu0 0.0
    %260 = vmatpush.msra.mxu0 0.0
    %261 = vmatpush.msra.mxu0 0.0
    %262 = vmatpush.msra.mxu0 0.0
    %263 = vmatpush.msra.mxu0 0.0
    %264 = vmatpush.msra.mxu0 0.0
    %265 = vmatpush.msra.mxu0 0.0
    %266 = vmatpush.msra.mxu0 0.0
    %267 = vmatpush.msra.mxu0 0.0
    %268 = vmatpush.msra.mxu0 0.0
    %269 = vmatpush.msra.mxu0 0.0
    %270 = vmatpush.msra.mxu0 %v52
    %271 = vmatpush.msra.mxu0 %v51
    %272 = vmatmul.f32.gmra.mxu0 %v254
    %v273 = vpop.f32.mrf.mxu0
    %v274 = vadd.f32 0.0, %v273
    %275 = vdwg.mxu0
    %v276 = vsel %vm214, %v226, 0
    %278 = vmatpush.msra.mxu0 0.0
    %279 = vmatpush.msra.mxu0 0.0
    %280 = vmatpush.msra.mxu0 0.0
    %281 = vmatpush.msra.mxu0 0.0
    %282 = vmatpush.msra.mxu0 0.0
    %283 = vmatpush.msra.mxu0 0.0
    %284 = vmatpush.msra.mxu0 0.0
    %285 = vmatpush.msra.mxu0 0.0
    %286 = vmatpush.msra.mxu0 0.0
    %287 = vmatpush.msra.mxu0 0.0
    %288 = vmatpush.msra.mxu0 0.0
    %289 = vmatpush.msra.mxu0 0.0
    %290 = vmatpush.msra.mxu0 0.0
    %291 = vmatpush.msra.mxu0 0.0
    %292 = vmatpush.msra.mxu0 %v54
    %293 = vmatpush.msra.mxu0 %v53
    %294 = vmatmul.f32.gmra.mxu0 %v276
    %v295 = vpop.f32.mrf.mxu0
    %v296 = vadd.f32 0.0, %v295
    %297 = vdwg.mxu0
    %v298 = vsel %vm214, %v227, 0
    %300 = vmatpush.msra.mxu0 0.0
    %301 = vmatpush.msra.mxu0 0.0
    %302 = vmatpush.msra.mxu0 0.0
    %303 = vmatpush.msra.mxu0 0.0
    %304 = vmatpush.msra.mxu0 0.0
    %305 = vmatpush.msra.mxu0 0.0
    %306 = vmatpush.msra.mxu0 0.0
    %307 = vmatpush.msra.mxu0 0.0
    %308 = vmatpush.msra.mxu0 0.0
    %309 = vmatpush.msra.mxu0 0.0
    %310 = vmatpush.msra.mxu0 0.0
    %311 = vmatpush.msra.mxu0 0.0
    %312 = vmatpush.msra.mxu0 0.0
    %313 = vmatpush.msra.mxu0 0.0
    %314 = vmatpush.msra.mxu0 %v56
    %315 = vmatpush.msra.mxu0 %v55
    %316 = vmatmul.f32.gmra.mxu0 %v298
    %v317 = vpop.f32.mrf.mxu0
    %v318 = vadd.f32 0.0, %v317
    %319 = vdwg.mxu0
    %v320 = vsel %vm214, %v228, 0
    %322 = vmatpush.msra.mxu0 0.0
    %323 = vmatpush.msra.mxu0 0.0
    %324 = vmatpush.msra.mxu0 0.0
    %325 = vmatpush.msra.mxu0 0.0
    %326 = vmatpush.msra.mxu0 0.0
    %327 = vmatpush.msra.mxu0 0.0
    %328 = vmatpush.msra.mxu0 0.0
    %329 = vmatpush.msra.mxu0 0.0
    %330 = vmatpush.msra.mxu0 0.0
    %331 = vmatpush.msra.mxu0 0.0
    %332 = vmatpush.msra.mxu0 0.0
    %333 = vmatpush.msra.mxu0 0.0
    %334 = vmatpush.msra.mxu0 0.0
    %335 = vmatpush.msra.mxu0 0.0
    %336 = vmatpush.msra.mxu0 %v58
    %337 = vmatpush.msra.mxu0 %v57
    %338 = vmatmul.f32.gmra.mxu0 %v320
    %v339 = vpop.f32.mrf.mxu0
    %v340 = vadd.f32 0.0, %v339
    %341 = vdwg.mxu0
    %v342 = vsel %vm214, %v229, 0
    %344 = vmatpush.msra.mxu0 0.0
    %345 = vmatpush.msra.mxu0 0.0
    %346 = vmatpush.msra.mxu0 0.0
    %347 = vmatpush.msra.mxu0 0.0
    %348 = vmatpush.msra.mxu0 0.0
    %349 = vmatpush.msra.mxu0 0.0
    %350 = vmatpush.msra.mxu0 0.0
    %351 = vmatpush.msra.mxu0 0.0
    %352 = vmatpush.msra.mxu0 0.0
    %353 = vmatpush.msra.mxu0 0.0
    %354 = vmatpush.msra.mxu0 0.0
    %355 = vmatpush.msra.mxu0 0.0
    %356 = vmatpush.msra.mxu0 0.0
    %357 = vmatpush.msra.mxu0 0.0
    %358 = vmatpush.msra.mxu0 %v60
    %359 = vmatpush.msra.mxu0 %v59
    %360 = vmatmul.f32.gmra.mxu0 %v342
    %v361 = vpop.f32.mrf.mxu0
    %v362 = vadd.f32 0.0, %v361
    %363 = vdwg.mxu0
    %v364 = vsel %vm214, %v230, 0
    %366 = vmatpush.msra.mxu0 0.0
    %367 = vmatpush.msra.mxu0 0.0
    %368 = vmatpush.msra.mxu0 0.0
    %369 = vmatpush.msra.mxu0 0.0
    %370 = vmatpush.msra.mxu0 0.0
    %371 = vmatpush.msra.mxu0 0.0
    %372 = vmatpush.msra.mxu0 0.0
    %373 = vmatpush.msra.mxu0 0.0
    %374 = vmatpush.msra.mxu0 0.0
    %375 = vmatpush.msra.mxu0 0.0
    %376 = vmatpush.msra.mxu0 0.0
    %377 = vmatpush.msra.mxu0 0.0
    %378 = vmatpush.msra.mxu0 0.0
    %379 = vmatpush.msra.mxu0 0.0
    %380 = vmatpush.msra.mxu0 %v62
    %381 = vmatpush.msra.mxu0 %v61
    %382 = vmatmul.f32.gmra.mxu0 %v364
    %v383 = vpop.f32.mrf.mxu0
    %v384 = vadd.f32 0.0, %v383
    %385 = vdwg.mxu0
    %v386 = vsel %vm214, %v231, 0
    %388 = vmatpush.msra.mxu0 0.0
    %389 = vmatpush.msra.mxu0 0.0
    %390 = vmatpush.msra.mxu0 0.0
    %391 = vmatpush.msra.mxu0 0.0
    %392 = vmatpush.msra.mxu0 0.0
    %393 = vmatpush.msra.mxu0 0.0
    %394 = vmatpush.msra.mxu0 0.0
    %395 = vmatpush.msra.mxu0 0.0
    %396 = vmatpush.msra.mxu0 0.0
    %397 = vmatpush.msra.mxu0 0.0
    %398 = vmatpush.msra.mxu0 0.0
    %399 = vmatpush.msra.mxu0 0.0
    %400 = vmatpush.msra.mxu0 0.0
    %401 = vmatpush.msra.mxu0 0.0
    %402 = vmatpush.msra.mxu0 %v64
    %403 = vmatpush.msra.mxu0 %v63
    %404 = vmatmul.f32.gmra.mxu0 %v386
    %v405 = vpop.f32.mrf.mxu0
    %v406 = vadd.f32 0.0, %v405
    %407 = vdwg.mxu0
    %v408 = vrcp.pop %v223
    %v409 = vmul.f32 %v223, %v408
    %v410 = vsub.f32 1.0, %v409
    %v411 = vmul.f32 %v408, %v410
    %v412 = vadd.f32 %v408, %v411
    %vm413 = vweird.f32 %v223
    %vm414 = vweird.f32 %v408
    %vm415 = vmor %vm413, %vm414
    %v416 = vsel %vm415, %v408, %v412
    %v417 = vand.u32 2147483647, %v223
    %vm418 = vcmp.eq.f32.partialorder %v417, 8.507059e+37
    %v419 = vand.u32 %v223, 2147483648
    %v420 = vor.u32 1.1754944e-38, %v419
    %v421 = vsel %vm418, %v420, %v416
    %v423 = vrot.slane %v421, 1
    %v424 = vrot.slane %v421, 2
    %v425 = vrot.slane %v421, 3
    %v426 = vrot.slane %v421, 4
    %v427 = vrot.slane %v421, 5
    %v428 = vrot.slane %v421, 6
    %v429 = vrot.slane %v421, 7
    %v438 = vmul.f32 %v252, %v421
    %v439 = vmul.f32 %v274, %v423
    %v440 = vmul.f32 %v296, %v424
    %v441 = vmul.f32 %v318, %v425
    %v442 = vmul.f32 %v340, %v426
    %v443 = vmul.f32 %v362, %v427
    %v444 = vmul.f32 %v384, %v428
    %v445 = vmul.f32 %v406, %v429
    %v454 = vrot.slane %v439, 7
    %v455 = vsel %vm198, %v454, %v438
    %v456 = vrot.slane %v440, 6
    %v457 = vsel %vm200, %v456, %v455
    %v458 = vrot.slane %v441, 5
    %v459 = vsel %vm202, %v458, %v457
    %v460 = vrot.slane %v442, 4
    %v461 = vsel %vm204, %v460, %v459
    %v462 = vrot.slane %v443, 3
    %v463 = vsel %vm206, %v462, %v461
    %v464 = vrot.slane %v444, 2
    %v465 = vsel %vm208, %v464, %v463
    %v466 = vrot.slane %v445, 1
    %v467 = vsel %vm210, %v466, %v465
    %469 = vst.msk [vmem:[#allocation8] sm:$0xff] %vm87, %v467
    // Predicated region
    $region26: #{tpu_custom_call.1} parent=1 // pred_check
      _
    $region27: #{tpu_custom_call.1} parent=1 // pred_check_branch
      %471 = sbr.rel (0) target = $region29
    $region28: #{tpu_custom_call.1} parent=1 // pred_region
      %473 = vsyncadd [#allocation5], 0
      %s475 = sshll.u32 [#allocation8], 4
      %s476 = int_to_ptr.vmem [resolvable:$true] %s475
      %s477 = sshll.u32 %s4, 4
      %s478 = int_to_ptr.hbm [resolvable:$true] %s477
      %480 = dma.vmem_to_hbm [thread:$0]  %s476, 128, %s478, [#allocation5]
    $region29: #{tpu_custom_call.1} parent=1 // pred_fallthru
      _
    // Predicated region
    $region30: #{tpu_custom_call.1} parent=1 // pred_check
      _
    $region31: #{tpu_custom_call.1} parent=1 // pred_check_branch
      %482 = sbr.rel (0) target = $region33
    $region32: #{tpu_custom_call.1} parent=1 // pred_region
      %484 = dma.done [#allocation5], 128
    $region33: #{tpu_custom_call.1} parent=1 // pred_fallthru
      _
    %485 = vsyncpa [#allocation4], 1
    %486 = vsyncpa [#allocation7], 1
    %487 = vsyncpa [#allocation5], 1

</llo_original>
